<compile_context>
chip_gen: v5e
topology: v5e:2x2
jax: 0.10.0
libtpu: 0.0.40
codegen_flags: <defaults>
</compile_context>

<pallas_src>
import jax
import jax.numpy as jnp
from jax import lax
from jax.experimental import pallas as pl
from jax.experimental.pallas import tpu as pltpu


def _residual_block_kernel(w_ref, bias_ref, patch_ref, out_ref):
    """One grid step = one batch element.

    w_ref     : (Cout, K*K*Cin)    bf16  fused conv weight (skip folded into center tap)
    bias_ref  : (Cout, 1)          f32   fused bias (conv bias + skip bias)
    patch_ref : (1, K*K*Cin, H*W)  bf16  im2col patches for this batch element
    out_ref   : (1, Cout, H*W)     f32   NCHW-flat output slab (lane-dense: H*W lanes)
    """
    # Single MXU matmul, contraction depth K*K*Cin, f32 accumulate.
    acc = jnp.dot(w_ref[...], patch_ref[0],
                  preferred_element_type=jnp.float32)        # (Cout, H*W)
    acc = acc + bias_ref[...]                                 # one fused bias add
    out_ref[0] = jnp.maximum(acc, 0.0).astype(out_ref.dtype)  # ReLU epilogue


def residual_block(x_nchw, conv_w, conv_b, corr_w=None, corr_b=None, *, kernel_size):
    """Forward pass of ResidualBlock.

    x_nchw : (B, Cin, H, W) float32   (PyTorch NCHW layout)
    conv_w : (Cout, Cin, K, K), conv_b : (Cout,)
    corr_w : (Cout, Cin, 1, 1) or None (None => Identity skip, requires Cin==Cout)
    corr_b : (Cout,) or None
    Returns (B, Cout, H, W) float32.
    """
    B, Cin, H, W = x_nchw.shape
    Cout = conv_w.shape[0]
    K = kernel_size
    P = (K - 1) // 2
    KKC = K * K * Cin
    HW = H * W

    # ---- layout plumbing (plain JAX) ---------------------------------------
    # Zero "same" padding + im2col:
    #   patches[b, (kh*K+kw)*Cin + c, h*W + w] = x_pad[b, c, h+kh, w+kw]
    x_pad = jnp.pad(x_nchw, ((0, 0), (0, 0), (P, P), (P, P)))
    wins = [x_pad[:, :, kh:kh + H, kw:kw + W]
            for kh in range(K) for kw in range(K)]            # each (B, Cin, H, W)
    patches = jnp.stack(wins, axis=1).reshape(B, KKC, HW)

    # Fuse the skip path into the center tap of the main conv weight.
    w_taps = jnp.transpose(conv_w, (0, 2, 3, 1)).reshape(Cout, K * K, Cin)
    if corr_w is None:                      # Identity skip (input_c == output_c)
        assert Cin == Cout, "Identity skip requires Cin == Cout"
        skip = jnp.eye(Cout, dtype=conv_w.dtype)
        bias = conv_b
    else:                                   # 1x1 channel-correction conv
        skip = corr_w[:, :, 0, 0]           # (Cout, Cin)
        bias = conv_b + corr_b
    w_taps = w_taps.at[:, P * K + P, :].add(skip)
    w_flat = w_taps.reshape(Cout, KKC)

    # bf16 MXU inputs, f32 accumulate / epilogue.
    patches = patches.astype(jnp.bfloat16)
    w_flat = w_flat.astype(jnp.bfloat16)
    bias = bias.astype(jnp.float32).reshape(Cout, 1)

    out = pl.pallas_call(
        _residual_block_kernel,
        out_shape=jax.ShapeDtypeStruct((B, Cout, HW), jnp.float32),
        grid_spec=pltpu.PrefetchScalarGridSpec(
            num_scalar_prefetch=0,
            grid=(B,),
            in_specs=[
                pl.BlockSpec((Cout, KKC), lambda b: (0, 0)),      # fused weight
                pl.BlockSpec((Cout, 1), lambda b: (0, 0)),        # fused bias
                pl.BlockSpec((1, KKC, HW), lambda b: (b, 0, 0)),  # im2col patches
            ],
            out_specs=pl.BlockSpec((1, Cout, HW), lambda b: (b, 0, 0)),
        ),
        compiler_params=pltpu.CompilerParams(
            dimension_semantics=("parallel",)),
    )(w_flat, bias, patches)

    return out.reshape(B, Cout, H, W)


def _reference(x, conv_w, conv_b, corr_w=None, corr_b=None, *, kernel_size):
    """Pure-JAX NCHW reference mirroring the PyTorch forward (f32)."""
    P = (kernel_size - 1) // 2
    dn = ("NCHW", "OIHW", "NCHW")
    y = lax.conv_general_dilated(x, conv_w, (1, 1), [(P, P), (P, P)],
                                 dimension_numbers=dn)
    y = y + conv_b[None, :, None, None]
    if corr_w is None:
        s = x
    else:
        s = lax.conv_general_dilated(x, corr_w, (1, 1), [(0, 0), (0, 0)],
                                     dimension_numbers=dn)
        s = s + corr_b[None, :, None, None]
    return jnp.maximum(y + s, 0.0)


if __name__ == "__main__":
    key = jax.random.PRNGKey(0)
    k_x, k_w, k_b, k_cw, k_cb, k_x2, k_w2, k_b2 = jax.random.split(key, 8)

    # Case 1: input_c != output_c  ->  1x1 channel-correction conv on the skip.
    B, Cin, Cout, H, W, K = 2, 4, 8, 16, 16, 3
    x = jax.random.normal(k_x, (B, Cin, H, W), dtype=jnp.float32)
    conv_w = jax.random.normal(k_w, (Cout, Cin, K, K), dtype=jnp.float32) * 0.1
    conv_b = jax.random.normal(k_b, (Cout,), dtype=jnp.float32) * 0.1
    corr_w = jax.random.normal(k_cw, (Cout, Cin, 1, 1), dtype=jnp.float32) * 0.1
    corr_b = jax.random.normal(k_cb, (Cout,), dtype=jnp.float32) * 0.1

    out = jax.block_until_ready(
        residual_block(x, conv_w, conv_b, corr_w, corr_b, kernel_size=K))
    ref = _reference(x, conv_w, conv_b, corr_w, corr_b, kernel_size=K)
    assert out.shape == (B, Cout, H, W)
    # bf16 MXU inputs with f32 accumulation -> compare at bf16-level tolerance.
    assert jnp.allclose(out, ref, atol=3e-2, rtol=3e-2), "mismatch (channel-fix case)"

    # Case 2: input_c == output_c  ->  Identity skip path.
    x2 = jax.random.normal(k_x2, (B, Cin, H, W), dtype=jnp.float32)
    conv_w2 = jax.random.normal(k_w2, (Cin, Cin, K, K), dtype=jnp.float32) * 0.1
    conv_b2 = jax.random.normal(k_b2, (Cin,), dtype=jnp.float32) * 0.1
    out2 = jax.block_until_ready(
        residual_block(x2, conv_w2, conv_b2, kernel_size=K))
    ref2 = _reference(x2, conv_w2, conv_b2, kernel_size=K)
    assert out2.shape == (B, Cin, H, W)
    assert jnp.allclose(out2, ref2, atol=3e-2, rtol=3e-2), "mismatch (identity case)"

    print("KERNEL_OK")
</pallas_src>

<mosaic_0001>
module attributes {stable_mosaic.version = 11 : i64} {
  func.func @_residual_block_kernel(%arg0: i32, %arg1: memref<8x36xbf16, #tpu.memory_space<vmem>>, %arg2: memref<8x1xf32, #tpu.memory_space<vmem>>, %arg3: memref<1x36x256xbf16, #tpu.memory_space<vmem>>, %arg4: memref<1x8x256xf32, #tpu.memory_space<vmem>>) attributes {dimension_semantics = [#tpu.dimension_semantics<parallel>], iteration_bounds = array<i64: 2>, scalar_prefetch = 0 : i64, scratch_operands = 0 : i64, tpu.core_type = #tpu.core_type<tc>, window_params = [{pipeline_mode = #tpu.pipeline_mode<synchronous>, transform_indices = @transform_0, window_bounds = array<i64: 8, 36>}, {pipeline_mode = #tpu.pipeline_mode<synchronous>, transform_indices = @transform_1, window_bounds = array<i64: 8, 1>}, {transform_indices = @transform_2, window_bounds = array<i64: 1, 36, 256>}, {transform_indices = @transform_3, window_bounds = array<i64: 1, 8, 256>}]} {
    %c0 = arith.constant 0 : index
    %c0_0 = arith.constant 0 : index
    %0 = vector.load %arg1[%c0, %c0_0] : memref<8x36xbf16, #tpu.memory_space<vmem>>, vector<8x36xbf16>
    %c0_1 = arith.constant 0 : index
    %c0_2 = arith.constant 0 : index
    %c0_3 = arith.constant 0 : index
    %1 = vector.load %arg3[%c0_1, %c0_2, %c0_3] : memref<1x36x256xbf16, #tpu.memory_space<vmem>>, vector<1x36x256xbf16>
    %2 = vector.shape_cast %1 : vector<1x36x256xbf16> to vector<36x256xbf16>
    %cst = arith.constant dense<0.000000e+00> : vector<8x256xf32>
    %3 = tpu.matmul %0, %2, %cst {dimension_numbers = #tpu.dot_dimension_numbers<[1], [0], [0], [1], [0, 0, 1, 1], [], []>} : vector<8x36xbf16>, vector<36x256xbf16>, vector<8x256xf32> -> vector<8x256xf32>
    %c0_4 = arith.constant 0 : index
    %c0_5 = arith.constant 0 : index
    %4 = vector.load %arg2[%c0_4, %c0_5] : memref<8x1xf32, #tpu.memory_space<vmem>>, vector<8x1xf32>
    %5 = vector.broadcast %4 : vector<8x1xf32> to vector<8x256xf32>
    %6 = arith.addf %3, %5 : vector<8x256xf32>
    %cst_6 = arith.constant 0.000000e+00 : f32
    %7 = vector.broadcast %cst_6 : f32 to vector<8x256xf32>
    %8 = arith.maximumf %6, %7 : vector<8x256xf32>
    %c0_7 = arith.constant 0 : index
    %c0_8 = arith.constant 0 : index
    %c0_9 = arith.constant 0 : index
    %9 = vector.load %arg4[%c0_7, %c0_8, %c0_9] : memref<1x8x256xf32, #tpu.memory_space<vmem>>, vector<1x8x256xf32>
    %10 = vector.shape_cast %9 : vector<1x8x256xf32> to vector<8x256xf32>
    %11 = vector.shape_cast %8 : vector<8x256xf32> to vector<1x8x256xf32>
    tpu.vector_store %arg4[%c0_7, %c0_8, %c0_9], %11 {strides = array<i32>} : memref<1x8x256xf32, #tpu.memory_space<vmem>>, vector<1x8x256xf32>,
    return
  }
  func.func @transform_0(%arg0: i32) -> (i32, i32) {
    %c0_i32 = arith.constant 0 : i32
    %c0_i32_0 = arith.constant 0 : i32
    %c0_i32_1 = arith.constant 0 : i32
    return %c0_i32, %c0_i32_0 : i32, i32
  }
  func.func @transform_1(%arg0: i32) -> (i32, i32) {
    %c0_i32 = arith.constant 0 : i32
    %c0_i32_0 = arith.constant 0 : i32
    %c0_i32_1 = arith.constant 0 : i32
    return %c0_i32, %c0_i32_0 : i32, i32
  }
  func.func @transform_2(%arg0: i32) -> (i32, i32, i32) {
    %c0_i32 = arith.constant 0 : i32
    %c0_i32_0 = arith.constant 0 : i32
    %c0_i32_1 = arith.constant 0 : i32
    return %arg0, %c0_i32, %c0_i32_0 : i32, i32, i32
  }
  func.func @transform_3(%arg0: i32) -> (i32, i32, i32) {
    %c0_i32 = arith.constant 0 : i32
    %c0_i32_0 = arith.constant 0 : i32
    %c0_i32_1 = arith.constant 0 : i32
    return %arg0, %c0_i32, %c0_i32_0 : i32, i32, i32
  }
}

</mosaic_0001>

<llo_original>
// kernel: tpu_custom_call.1
$region0: #{tpu_custom_call.1}
  #allocation0 [shape = 'u32[]', space=smem, size = 0x4, offset = 0x4, fixed_abs, tag = 'smem constant byte address 0x4 - core index']
  #allocation1 [shape = 'u32[72,128]{1,0:T(1,128)}', space=vmem, size = 0x9000, scoped, tag = 'internal scratch']
  %s0 = inlined_call_operand.vmem [shape: bf16[8,36], index: 0, kind: input, shape index: {}]
  %s1 = inlined_call_operand.vmem [shape: f32[8,1], index: 1, kind: input, shape index: {}]
  %s2 = inlined_call_operand.vmem [shape: bf16[2,36,256], index: 2, kind: input, shape index: {}]
  %s3 = inlined_call_operand.hbm [shape: f32[2,8,256], index: 3, kind: output, shape index: {}]
  %s4 = sld [smem:[#allocation0]]
  $region45: #{tpu_custom_call.1} parent=0
    _
  %s6 = ssub.s32 1, %s4
  %s7 = scalar_select 0, %s6, %s4
  $region1: #{tpu_custom_call.1} parent=0
    #allocation2 [shape = 'u8[16384]{0}', space=vmem, size = 0x4000, scoped, tag = 'output window, operand 0']
    #allocation3 [shape = 's32[2]{0}', space=sflag, size = 0x8, scoped, tag = 'scoped memory for tpu_custom_call.1']
    %8 = vsyncpa [#allocation3], 0
    %s9 = scalar_lea.sflag [#allocation3], 1
    %10 = vsyncpa %s9, 0
    loop: start=0, step=1, limit=4
    $region2: #{tpu_custom_call.1} parent=1 // loop_pre_header
      _
    $region3: #{tpu_custom_call.1} parent=1 // loop_header
      %s12 = sphi 0, %s16
      %p13 = scmp.ge.s32.totalorder %s12, 4
      %s20 = sphi 0, %s20
      %s22 = sphi 0, %s20
      %s23 = sphi 0, %s22
      %s37 = sphi 0, %s23
      %s41 = sphi 0, %s41
      %s43 = sphi 0, %s41
      %s44 = sphi 0, %s43
      %s58 = sphi 0, %s44
      %s64 = sphi 0, %s66
      %s67 = sphi 0, %s64
      %s68 = sphi 0, %s67
      %s84 = sphi 0, %s68
      %s90 = sphi 0, %s92
      %s93 = sphi 0, %s90
      %s94 = sphi 0, %s93
      %s110 = sphi 0, %s94
    $region4: #{tpu_custom_call.1} parent=1 // loop_header_branch
      %15 = sbr.rel (%p13) target = $region8
    $region5: #{tpu_custom_call.1} parent=1 // loop_body
      %s17 = ssub.s32 %s12, 1
      %s18 = ssub.s32 %s12, 2
      %s19 = sadd.s32 %s12, 1
      %s21 = sadd.s32 %s20, 1
      %p24 = scmp.eq.s32.totalorder %s12, 1
      %p25 = scmp.ne.s32.totalorder %s20, %s22
      %p26 = scmp.eq.s32.totalorder %s12, 0
      %p27 = por %p25, %p26
      %p28 = scmp.ne.s32.totalorder %s20, %s22
      %p29 = scmp.eq.s32.totalorder %s17, 1
      %p30 = por %p28, %p29
      %p31 = scmp.ne.s32.totalorder %s22, %s23
      %p32 = scmp.eq.s32.totalorder %s17, 0
      %p33 = por %p31, %p32
      %p34 = scmp.ne.s32.totalorder %s22, %s23
      %p35 = scmp.eq.s32.totalorder %s18, 1
      %p36 = por %p34, %p35
      %p38 = scmp.ne.s32.totalorder %s23, %s37
      %p39 = scmp.eq.s32.totalorder %s18, 0
      %p40 = por %p38, %p39
      %s42 = sadd.s32 %s41, 1
      %p45 = scmp.eq.s32.totalorder %s12, 1
      %p46 = scmp.ne.s32.totalorder %s41, %s43
      %p47 = scmp.eq.s32.totalorder %s12, 0
      %p48 = por %p46, %p47
      %p49 = scmp.ne.s32.totalorder %s41, %s43
      %p50 = scmp.eq.s32.totalorder %s17, 1
      %p51 = por %p49, %p50
      %p52 = scmp.ne.s32.totalorder %s43, %s44
      %p53 = scmp.eq.s32.totalorder %s17, 0
      %p54 = por %p52, %p53
      %p55 = scmp.ne.s32.totalorder %s43, %s44
      %p56 = scmp.eq.s32.totalorder %s18, 1
      %p57 = por %p55, %p56
      %p59 = scmp.ne.s32.totalorder %s44, %s58
      %p60 = scmp.eq.s32.totalorder %s18, 0
      %p61 = por %p59, %p60
      %s62 = ssub.s32 %s12, %s19
      %p63 = scmp.eq.s32.totalorder %s62, 0
      %s65 = sadd.s32 %s64, 1
      %s66 = scalar_select %p63, %s64, %s65
      %p69 = pneg %p63
      %p70 = scmp.eq.s32.totalorder %s12, 1
      %p71 = por %p69, %p70
      %p72 = scmp.ne.s32.totalorder %s64, %s67
      %p73 = scmp.eq.s32.totalorder %s12, 0
      %p74 = por %p72, %p73
      %p75 = scmp.ne.s32.totalorder %s64, %s67
      %p76 = scmp.eq.s32.totalorder %s17, 1
      %p77 = por %p75, %p76
      %p78 = scmp.ne.s32.totalorder %s67, %s68
      %p79 = scmp.eq.s32.totalorder %s17, 0
      %p80 = por %p78, %p79
      %p81 = scmp.ne.s32.totalorder %s67, %s68
      %p82 = scmp.eq.s32.totalorder %s18, 1
      %p83 = por %p81, %p82
      %p85 = scmp.ne.s32.totalorder %s68, %s84
      %p86 = scmp.eq.s32.totalorder %s18, 0
      %p87 = por %p85, %p86
      %s88 = ssub.s32 %s12, %s19
      %p89 = scmp.eq.s32.totalorder %s88, 0
      %s91 = sadd.s32 %s90, 1
      %s92 = scalar_select %p89, %s90, %s91
      %p95 = pneg %p89
      %p96 = scmp.eq.s32.totalorder %s12, 1
      %p97 = por %p95, %p96
      %p98 = scmp.ne.s32.totalorder %s90, %s93
      %p99 = scmp.eq.s32.totalorder %s12, 0
      %p100 = por %p98, %p99
      %p101 = scmp.ne.s32.totalorder %s90, %s93
      %p102 = scmp.eq.s32.totalorder %s17, 1
      %p103 = por %p101, %p102
      %p104 = scmp.ne.s32.totalorder %s93, %s94
      %p105 = scmp.eq.s32.totalorder %s17, 0
      %p106 = por %p104, %p105
      %p107 = scmp.ne.s32.totalorder %s93, %s94
      %p108 = scmp.eq.s32.totalorder %s18, 1
      %p109 = por %p107, %p108
      %p111 = scmp.ne.s32.totalorder %s94, %s110
      %p112 = scmp.eq.s32.totalorder %s18, 0
      %p113 = por %p111, %p112
      %p114 = scmp.le.s32.totalorder 1, %s12
      %p115 = scmp.lt.s32.totalorder %s12, 3
      %p116 = pnand %p114, %p115
      %p117 = pneg %p116
      // Predicated region
      $region9: #{tpu_custom_call.1} parent=5 // pred_check
        _
      $region10: #{tpu_custom_call.1} parent=5 // pred_check_branch
        %119 = sbr.rel (%p116) target = $region12
      $region11: #{tpu_custom_call.1} parent=5 // pred_region
        %s120 = ssub.s32 %s12, 1
        // Predicated region
        $region13: #{tpu_custom_call.1} parent=11 // pred_check
          %p121 = pneg %p33
        $region14: #{tpu_custom_call.1} parent=11 // pred_check_branch
          %123 = sbr.rel (%p121) target = $region16
        $region15: #{tpu_custom_call.1} parent=11 // pred_region
          _
        $region16: #{tpu_custom_call.1} parent=11 // pred_fallthru
          _
        // Predicated region
        $region17: #{tpu_custom_call.1} parent=11 // pred_check
          %p124 = pneg %p54
        $region18: #{tpu_custom_call.1} parent=11 // pred_check_branch
          %126 = sbr.rel (%p124) target = $region20
        $region19: #{tpu_custom_call.1} parent=11 // pred_region
          _
        $region20: #{tpu_custom_call.1} parent=11 // pred_fallthru
          _
      $region12: #{tpu_custom_call.1} parent=5 // pred_fallthru
        _
      %p127 = scmp.lt.s32.totalorder %s12, 2
      // Predicated region
      $region21: #{tpu_custom_call.1} parent=5 // pred_check
        %p128 = pneg %p127
      $region22: #{tpu_custom_call.1} parent=5 // pred_check_branch
        %130 = sbr.rel (%p128) target = $region24
      $region23: #{tpu_custom_call.1} parent=5 // pred_region
        // Predicated region
        $region25: #{tpu_custom_call.1} parent=23 // pred_check
          %p131 = pneg %p74
        $region26: #{tpu_custom_call.1} parent=23 // pred_check_branch
          %133 = sbr.rel (%p131) target = $region28
        $region27: #{tpu_custom_call.1} parent=23 // pred_region
          %p134 = scmp.lt.s32.totalorder %s12, 1
          %s135 = scalar_select %p134, %s12, 1
          %s136 = smul.addr %s135, 10
          %s137 = smul.addr %s136, 4
          %s138 = scalar_lea.vmem %s2, %s137
        $region28: #{tpu_custom_call.1} parent=23 // pred_fallthru
          _
      $region24: #{tpu_custom_call.1} parent=5 // pred_fallthru
        _
      %p139 = scmp.le.s32.totalorder 1, %s12
      %p140 = scmp.lt.s32.totalorder %s12, 3
      %p141 = pnand %p139, %p140
      %p142 = pneg %p141
      // Predicated region
      $region29: #{tpu_custom_call.1} parent=5 // pred_check
        _
      $region30: #{tpu_custom_call.1} parent=5 // pred_check_branch
        %144 = sbr.rel (%p141) target = $region32
      $region31: #{tpu_custom_call.1} parent=5 // pred_region
        %s145 = ssub.s32 %s12, 1
        %p146 = pneg %p33
        %p147 = pneg %p30
        %p148 = pneg %p54
        %p149 = pneg %p51
        %p150 = scmp.lt.s32.totalorder %s17, 1
        %s151 = scalar_select %p150, %s17, 1
        %s152 = smul.addr %s151, 10
        %s153 = smul.addr %s152, 4
        %s154 = scalar_lea.vmem %s2, %s153
        %p155 = pneg %p80
        %p156 = pneg %p77
        %p157 = pneg %p106
        %p158 = pneg %p103
        %s159 = sand.u32 %s93, 1
        %s160 = scalar_lea.sflag [#allocation3], %s159
        %s161 = sand.u32 %s93, 1
        %s162 = smul.addr %s161, 16
        %s163 = scalar_lea.vmem [#allocation2], %s162
        %p164 = scmp.lt.s32.totalorder %s17, 1
        %s165 = scalar_select %p164, %s17, 1
        %s166 = smul.addr %s165, 10
        %s167 = smul.addr %s166, 4
        %s168 = scalar_lea.vmem %s2, %s167
        %v170 = vld [vmem:[%s0] sm:$0xf]
        %v171 = vld [vmem:[%s168] sm:$0xff]
        %v172 = vld [vmem:[%s168 + $0x8] sm:$0xff]
        %v173 = vld [vmem:[%s168 + $0x10] sm:$0xff]
        %v174 = vld [vmem:[%s168 + $0x18] sm:$0xff]
        %v175 = vld [vmem:[%s168 + $0x20] sm:$0x33]
        %v176 = vld [vmem:[%s1] sm:$0xff]
        %178 = vset.pattern.permute.xlu0 0
        %179 = vperm.xlu0 %178, %v176
        %v180 = vpop.permute.xlu0 %179
        %v187 = vunpack.c.l.b16 %v171
        %v188 = vunpack.c.h.b16 %v171
        %v189 = vunpack.c.l.b16 %v172
        %v190 = vunpack.c.h.b16 %v172
        %v191 = vunpack.c.l.b16 %v173
        %v192 = vunpack.c.h.b16 %v173
        %v193 = vunpack.c.l.b16 %v174
        %v194 = vunpack.c.h.b16 %v174
        %v195 = vunpack.c.l.b16 %v175
        %v196 = vunpack.c.h.b16 %v175
        %v197 = vpack.c.b16 %v189, %v187
        %v198 = vpack.c.b16 %v190, %v188
        %v199 = vpack.c.b16 %v193, %v191
        %v200 = vpack.c.b16 %v194, %v192
        %v201 = vpack.c.b16 %v195, %v195
        %v202 = vpack.c.b16 %v196, %v196
        %vm207 = vcmask 293888
        %v209 = vsel %vm207, %v170, 0
        %vm211 = vcmask 1041408
        %v213 = vsel %vm211, %v201, 0
        %v216 = vsel %vm211, %v202, 0
        %218 = vmatpush.bf16.msra.mxu0 0
        %219 = vmatpush.bf16.msra.mxu0 0
        %220 = vmatpush.bf16.msra.mxu0 0
        %221 = vmatpush.bf16.msra.mxu0 0
        %222 = vmatpush.bf16.msra.mxu0 0
        %223 = vmatpush.bf16.msra.mxu0 %v213
        %224 = vmatpush.bf16.msra.mxu0 %v199
        %225 = vmatpush.bf16.msra.mxu0 %v197
        %226 = vmatmul.bf16.gmra.mxu0 %v209
        %v227 = vpop.f32.mrf.mxu0
        %v228 = vadd.f32 %v180, %v227
        %v229 = vpop.f32.mrf.mxu0
        %230 = vdwg.mxu0
        %231 = vmatpush.bf16.msra.mxu0 0
        %232 = vmatpush.bf16.msra.mxu0 0
        %233 = vmatpush.bf16.msra.mxu0 0
        %234 = vmatpush.bf16.msra.mxu0 0
        %235 = vmatpush.bf16.msra.mxu0 0
        %236 = vmatpush.bf16.msra.mxu0 %v216
        %237 = vmatpush.bf16.msra.mxu0 %v200
        %238 = vmatpush.bf16.msra.mxu0 %v198
        %239 = vmatmul.bf16.gmra.mxu0 %v209
        %v240 = vpop.f32.mrf.mxu0
        %v241 = vadd.f32 %v180, %v240
        %v242 = vpop.f32.mrf.mxu0
        %243 = vdwg.mxu0
        %v244 = vmax.f32 %v228, 0.0
        %v245 = vmax.f32 %v241, 0.0
        %246 = vst [vmem:[%s163] sm:$0xff] %v244
        %247 = vst [vmem:[%s163 + $0x8] sm:$0xff] %v245
        %s248 = sand.u32 %s93, 1
        %s249 = scalar_lea.sflag [#allocation3], %s248
        %s250 = sand.u32 %s93, 1
        %s251 = smul.addr %s250, 16
        %s252 = scalar_lea.vmem [#allocation2], %s251
        // Predicated region
        $region33: #{tpu_custom_call.1} parent=31 // pred_check
          %p253 = pneg %p103
        $region34: #{tpu_custom_call.1} parent=31 // pred_check_branch
          %255 = sbr.rel (%p253) target = $region36
        $region35: #{tpu_custom_call.1} parent=31 // pred_region
          %257 = vsyncadd %s249, 0
          %s258 = smul.addr %s17, 2
          %s259 = smul.addr %s258, 8
          %s260 = scalar_lea.hbm %s3, %s259
          %s262 = sshll.u32 %s252, 4
          %s263 = int_to_ptr.vmem [resolvable:$true] %s262
          %s264 = sshll.u32 %s260, 4
          %s265 = int_to_ptr.hbm [resolvable:$true] %s264
          %267 = dma.vmem_to_hbm [thread:$0]  %s263, 256, %s265, %s249
        $region36: #{tpu_custom_call.1} parent=31 // pred_fallthru
          _
      $region32: #{tpu_custom_call.1} parent=5 // pred_fallthru
        _
      %p268 = scmp.le.s32.totalorder 2, %s12
      // Predicated region
      $region37: #{tpu_custom_call.1} parent=5 // pred_check
        %p269 = pneg %p268
      $region38: #{tpu_custom_call.1} parent=5 // pred_check_branch
        %271 = sbr.rel (%p269) target = $region40
      $region39: #{tpu_custom_call.1} parent=5 // pred_region
        %s272 = ssub.s32 %s12, 2
        // Predicated region
        $region41: #{tpu_custom_call.1} parent=39 // pred_check
          %p273 = pneg %p109
        $region42: #{tpu_custom_call.1} parent=39 // pred_check_branch
          %275 = sbr.rel (%p273) target = $region44
        $region43: #{tpu_custom_call.1} parent=39 // pred_region
          %s276 = sand.u32 %s94, 1
          %s277 = scalar_lea.sflag [#allocation3], %s276
          %s278 = sand.u32 %s94, 1
          %s279 = smul.addr %s278, 16
          %s280 = scalar_lea.vmem [#allocation2], %s279
          %282 = dma.done %s277, 256
        $region44: #{tpu_custom_call.1} parent=39 // pred_fallthru
          _
      $region40: #{tpu_custom_call.1} parent=5 // pred_fallthru
        _
    $region6: #{tpu_custom_call.1} parent=1 // loop_footer
      %s16 = sadd.s32 1, %s12
    $region7: #{tpu_custom_call.1} parent=1 // loop_footer_branch
      %11 = sbr.rel target = $region3
    $region8: #{tpu_custom_call.1} parent=1 // loop_exit
      _
    %283 = vsyncpa [#allocation3], 1
    %s284 = scalar_lea.sflag [#allocation3], 1
    %285 = vsyncpa %s284, 1

</llo_original>
